<compile_context>
chip_gen: v5e
topology: v5e:2x2
jax: 0.10.0
libtpu: 0.0.40
codegen_flags: <defaults>
</compile_context>

<pallas_src>
import functools

import jax
import jax.numpy as jnp
from jax.experimental import pallas as pl
from jax.experimental.pallas import tpu as pltpu

_MAX_TILE_PIXELS = 1 << 20          # hard cap on lane-axis pixels per block


def _vmem_capacity_bytes():
    """Per-TensorCore VMEM capacity; falls back to 128 MiB if unknown."""
    try:
        info = pltpu.get_tpu_info()
        cap = getattr(info, "vmem_capacity_bytes", None)
        if cap:
            return int(cap)
    except Exception:
        pass
    return 128 * 1024 * 1024


def _dice_sums_kernel(logits_ref, labels_ref, out_ref, inter_acc, tsum_acc,
                      *, hw):
    t = pl.program_id(2)
    n_t_inner = pl.num_programs(2)

    @pl.when(t == 0)
    def _():
        inter_acc[...] = jnp.zeros_like(inter_acc)
        tsum_acc[...] = jnp.zeros_like(tsum_acc)

    x = logits_ref[0]                         # (C, TILE), native dtype
    labels = labels_ref[0]                    # (1, TILE) int32
    n_classes, tile = x.shape

    # Flat tile index along the (possibly core-split) pixel axis; mask columns
    # beyond the real image (covers both the partial boundary block and any
    # fully-out-of-range block produced by the P-way core split).
    ft = pl.program_id(1) * n_t_inner + t
    lane = jax.lax.broadcasted_iota(jnp.int32, labels.shape, 1)
    pix = ft * tile + lane
    valid = jnp.logical_and(
        pix < hw, jnp.logical_and(labels >= 0, labels < n_classes))

    # Numerically stable softmax pieces over the channel (sublane) axis in the
    # input dtype (bf16 stays bf16 on v6e/v7x); accumulate sums in f32.
    m = jnp.max(x, axis=0, keepdims=True)                       # (1, TILE)
    e = jnp.exp(x - m)                                          # (C, TILE)
    denom = jnp.sum(e, axis=0, keepdims=True, dtype=jnp.float32)

    # Gather e[label] per pixel via iota-compare (out-of-range labels -> 0).
    ch = jax.lax.broadcasted_iota(jnp.int32, x.shape, 0)        # (C, TILE)
    zero = jnp.zeros((), e.dtype)
    gathered = jnp.sum(jnp.where(ch == labels, e, zero), axis=0,
                       keepdims=True, dtype=jnp.float32)

    # Approx reciprocal on the otherwise-idle EUP slot + one Newton-Raphson
    # refinement to restore full f32 accuracy.
    r = pl.reciprocal(denom, approx=True)
    r = r * (2.0 - denom * r)

    # NaN-safe: select (not multiply) so garbage tail columns never propagate.
    inter_acc[...] += jnp.where(valid, gathered * r, 0.0)
    tsum_acc[...] += valid.astype(jnp.float32)

    @pl.when(t == n_t_inner - 1)
    def _():
        inter_s = jnp.sum(inter_acc[...])
        tsum_s = jnp.sum(tsum_acc[...])
        lane_o = jax.lax.broadcasted_iota(jnp.int32, out_ref.shape, 2)
        out_ref[...] = jnp.where(lane_o == 0, inter_s,
                                 jnp.where(lane_o == 1, tsum_s, 0.0))


def _ignore_remap(target, ignore_index):
    # Mirrors:  if ignore_index not in range(t.min(), t.max()):
    #               if (t == ignore).sum() > 0: t[t == ignore] = t.min()
    tmin = jnp.min(target)
    tmax = jnp.max(target)
    in_range = jnp.logical_and(ignore_index >= tmin, ignore_index < tmax)
    has_ignore = jnp.any(target == ignore_index)
    do_replace = jnp.logical_and(jnp.logical_not(in_range), has_ignore)
    return jnp.where(
        jnp.logical_and(do_replace, target == ignore_index), tmin, target
    )


@functools.partial(jax.jit, static_argnames=("smooth", "ignore_index"))
def dice_loss_pallas(output, target, smooth=1.0, ignore_index=255):
    B, C, H, W = output.shape
    HW = H * W
    itemsize = jnp.dtype(output.dtype).itemsize

    target = _ignore_remap(target.astype(jnp.int32), ignore_index)
    # target.unique(dim=1): dim 1 has size 1 -> identity, nothing to do.

    # Free, contiguous reshapes straight from NCHW (no transpose, no pad,
    # no f32 cast, no HBM copies).
    logits = output.reshape(B, C, HW)
    labels = target.reshape(B, 1, HW)

    # Generation-aware tiling / scoped-VMEM budget.
    vmem_cap = _vmem_capacity_bytes()
    if vmem_cap <= 64 * 1024 * 1024:          # v7x-class: 64 MiB per TC
        vmem_limit = 48 * 1024 * 1024
        block_bytes = 4 * 1024 * 1024
    else:                                     # v5e / v6e: 128 MiB per TC
        vmem_limit = 96 * 1024 * 1024
        block_bytes = 8 * 1024 * 1024

    # Per-pixel VMEM model: 2x double-buffered logits + ~3 (C,tile) f32 temps
    # + 2x double-buffered int32 labels + 2 (1,tile) f32 scratch accumulators.
    per_pixel = 2 * C * itemsize + 3 * C * 4 + 2 * 4 + 2 * 4
    budget = (vmem_limit * 3) // 4
    tile = min(block_bytes // (itemsize * C), budget // per_pixel,
               _MAX_TILE_PIXELS)
    tile = max(128, (tile // 128) * 128)
    if HW <= tile:
        tile = HW
    n_t = -(-HW // tile)

    # Split the pixel axis across two parallel chunks so both v7x TensorCores
    # get work even when B == 1 (no-op cost on single-TC v5e/v6e).
    P = 2 if n_t >= 2 else 1
    n_t_inner = -(-n_t // P)

    def in_idx(b, p, t):
        # Clamp so boundary DMAs stay in-bounds; fully-out-of-range tiles are
        # masked in-kernel by the pixel-index iota.
        return (b, 0, jnp.minimum(p * n_t_inner + t, n_t - 1))

    kernel = functools.partial(_dice_sums_kernel, hw=HW)

    cost = pl.CostEstimate(
        flops=8 * B * HW * C,
        transcendentals=B * HW * C,
        bytes_accessed=B * HW * (C * itemsize + 4) + B * P * 128 * 4,
    )

    sums = pl.pallas_call(
        kernel,
        out_shape=jax.ShapeDtypeStruct((B * P, 1, 128), jnp.float32),
        grid_spec=pltpu.PrefetchScalarGridSpec(
            num_scalar_prefetch=0,
            grid=(B, P, n_t_inner),
            in_specs=[
                pl.BlockSpec((1, C, tile), in_idx),
                pl.BlockSpec((1, 1, tile), in_idx),
            ],
            out_specs=pl.BlockSpec((1, 1, 128),
                                   lambda b, p, t: (b * P + p, 0, 0)),
            scratch_shapes=[
                pltpu.VMEM((1, tile), jnp.float32),   # intersection partials
                pltpu.VMEM((1, tile), jnp.float32),   # one-hot count partials
            ],
        ),
        compiler_params=pltpu.CompilerParams(
            dimension_semantics=("parallel", "parallel", "arbitrary"),
            vmem_limit_bytes=vmem_limit,
        ),
        cost_estimate=cost,
    )(logits, labels)

    inter = jnp.sum(sums[:, 0, 0])
    tsum = jnp.sum(sums[:, 0, 1])
    osum = jnp.float32(B * HW)  # sum(softmax) over all real pixels == #pixels
    return 1.0 - (2.0 * inter + smooth) / (osum + tsum + smooth)


def dice_loss_ref(output, target, smooth=1.0, ignore_index=255):
    # Pure-JAX reference for validation.
    C = output.shape[1]
    target = _ignore_remap(target.astype(jnp.int32), ignore_index)
    onehot = jax.nn.one_hot(target[:, 0], C, dtype=jnp.float32)      # (B,H,W,C)
    onehot = jnp.transpose(onehot, (0, 3, 1, 2))                     # (B,C,H,W)
    probs = jax.nn.softmax(output.astype(jnp.float32), axis=1)
    inter = jnp.sum(probs * onehot)
    return 1.0 - (2.0 * inter + smooth) / (jnp.sum(probs) + jnp.sum(onehot) + smooth)


if __name__ == "__main__":
    key = jax.random.PRNGKey(0)
    k1, k2 = jax.random.split(key)

    B, C, H, W = 2, 4, 16, 16
    output = jax.random.normal(k1, (B, C, H, W), dtype=jnp.float32)
    target = jax.random.randint(k2, (B, 1, H, W), 0, C, dtype=jnp.int32)
    # sprinkle some ignore_index pixels to exercise the remap branch
    target = target.at[0, 0, 0, :3].set(255)

    loss = dice_loss_pallas(output, target, smooth=1.0, ignore_index=255)
    jax.block_until_ready(loss)

    ref = dice_loss_ref(output, target, smooth=1.0, ignore_index=255)
    assert jnp.isfinite(loss), "non-finite loss"
    assert jnp.abs(loss - ref) < 1e-5, (loss, ref)
    print("KERNEL_OK")
</pallas_src>

<mosaic_0001>
module attributes {stable_mosaic.version = 11 : i64} {
  func.func @_dice_sums_kernel(%arg0: i32, %arg1: i32, %arg2: i32, %arg3: memref<1x4x256xf32, #tpu.memory_space<vmem>>, %arg4: memref<1x1x256xi32, #tpu.memory_space<vmem>>, %arg5: memref<1x1x128xf32, #tpu.memory_space<vmem>>, %arg6: memref<1x256xf32, #tpu.memory_space<vmem>>, %arg7: memref<1x256xf32, #tpu.memory_space<vmem>>) attributes {dimension_semantics = [#tpu.dimension_semantics<parallel>, #tpu.dimension_semantics<parallel>, #tpu.dimension_semantics<arbitrary>], iteration_bounds = array<i64: 2, 1, 1>, scalar_prefetch = 0 : i64, scratch_operands = 2 : i64, tpu.core_type = #tpu.core_type<tc>, window_params = [{transform_indices = @transform_0, window_bounds = array<i64: 1, 4, 256>}, {transform_indices = @transform_1, window_bounds = array<i64: 1, 1, 256>}, {transform_indices = @transform_2, window_bounds = array<i64: 1, 1, 128>}]} {
    %c0_i32 = arith.constant 0 : i32
    %0 = arith.cmpi eq, %arg2, %c0_i32 : i32
    %1 = arith.extui %0 : i1 to i32
    %c0_i32_0 = arith.constant 0 : i32
    %2 = arith.cmpi ne, %1, %c0_i32_0 : i32
    scf.if %2 {
      %cst_23 = arith.constant 0.000000e+00 : f32
      %54 = vector.broadcast %cst_23 : f32 to vector<1x256xf32>
      %c0_24 = arith.constant 0 : index
      %c0_25 = arith.constant 0 : index
      %55 = vector.load %arg6[%c0_24, %c0_25] : memref<1x256xf32, #tpu.memory_space<vmem>>, vector<1x256xf32>
      tpu.vector_store %arg6[%c0_24, %c0_25], %54 {strides = array<i32>} : memref<1x256xf32, #tpu.memory_space<vmem>>, vector<1x256xf32>,
      %cst_26 = arith.constant 0.000000e+00 : f32
      %56 = vector.broadcast %cst_26 : f32 to vector<1x256xf32>
      %c0_27 = arith.constant 0 : index
      %c0_28 = arith.constant 0 : index
      %57 = vector.load %arg7[%c0_27, %c0_28] : memref<1x256xf32, #tpu.memory_space<vmem>>, vector<1x256xf32>
      tpu.vector_store %arg7[%c0_27, %c0_28], %56 {strides = array<i32>} : memref<1x256xf32, #tpu.memory_space<vmem>>, vector<1x256xf32>,
    } else {
    }
    %c0 = arith.constant 0 : index
    %c0_1 = arith.constant 0 : index
    %c0_2 = arith.constant 0 : index
    %3 = vector.load %arg3[%c0, %c0_1, %c0_2] : memref<1x4x256xf32, #tpu.memory_space<vmem>>, vector<1x4x256xf32>
    %4 = vector.shape_cast %3 : vector<1x4x256xf32> to vector<4x256xf32>
    %c0_3 = arith.constant 0 : index
    %c0_4 = arith.constant 0 : index
    %c0_5 = arith.constant 0 : index
    %5 = vector.load %arg4[%c0_3, %c0_4, %c0_5] : memref<1x1x256xi32, #tpu.memory_space<vmem>>, vector<1x1x256xi32>
    %6 = vector.shape_cast %5 : vector<1x1x256xi32> to vector<1x256xi32>
    %c1_i32 = arith.constant 1 : i32
    %7 = arith.muli %arg1, %c1_i32 : i32
    %8 = arith.addi %7, %arg2 : i32
    %9 = tpu.iota {dimensions = array<i32: 1>} : vector<1x256xi32>
    %c256_i32 = arith.constant 256 : i32
    %10 = arith.muli %8, %c256_i32 : i32
    %11 = vector.broadcast %10 : i32 to vector<1x256xi32>
    %12 = arith.addi %11, %9 : vector<1x256xi32>
    %c256_i32_6 = arith.constant 256 : i32
    %13 = vector.broadcast %c256_i32_6 : i32 to vector<1x256xi32>
    %14 = arith.cmpi slt, %12, %13 : vector<1x256xi32>
    %c0_i32_7 = arith.constant 0 : i32
    %15 = vector.broadcast %c0_i32_7 : i32 to vector<1x256xi32>
    %16 = arith.cmpi sge, %6, %15 : vector<1x256xi32>
    %c4_i32 = arith.constant 4 : i32
    %17 = vector.broadcast %c4_i32 : i32 to vector<1x256xi32>
    %18 = arith.cmpi slt, %6, %17 : vector<1x256xi32>
    %19 = arith.andi %16, %18 : vector<1x256xi1>
    %20 = arith.andi %14, %19 : vector<1x256xi1>
    %cst = arith.constant dense<0xFF800000> : vector<256xf32>
    %21 = vector.multi_reduction <maximumf>, %4, %cst [0] : vector<4x256xf32> to vector<256xf32>
    %22 = vector.shape_cast %21 : vector<256xf32> to vector<1x256xf32>
    %23 = vector.broadcast %22 : vector<1x256xf32> to vector<4x256xf32>
    %24 = arith.subf %4, %23 : vector<4x256xf32>
    %25 = math.exp %24 : vector<4x256xf32>
    %cst_8 = arith.constant dense<0.000000e+00> : vector<256xf32>
    %26 = vector.multi_reduction <add>, %25, %cst_8 [0] : vector<4x256xf32> to vector<256xf32>
    %27 = vector.shape_cast %26 : vector<256xf32> to vector<1x256xf32>
    %28 = tpu.iota {dimensions = array<i32: 0>} : vector<4x256xi32>
    %29 = vector.broadcast %6 : vector<1x256xi32> to vector<4x256xi32>
    %30 = arith.cmpi eq, %28, %29 : vector<4x256xi32>
    %cst_9 = arith.constant 0.000000e+00 : f32
    %31 = vector.broadcast %cst_9 : f32 to vector<4x256xf32>
    %32 = arith.select %30, %25, %31 : vector<4x256xi1>, vector<4x256xf32>
    %cst_10 = arith.constant dense<0.000000e+00> : vector<256xf32>
    %33 = vector.multi_reduction <add>, %32, %cst_10 [0] : vector<4x256xf32> to vector<256xf32>
    %34 = vector.shape_cast %33 : vector<256xf32> to vector<1x256xf32>
    %35 = tpu.reciprocal %27 {approx = true} : vector<1x256xf32> -> vector<1x256xf32>
    %36 = arith.mulf %27, %35 : vector<1x256xf32>
    %cst_11 = arith.constant 2.000000e+00 : f32
    %37 = vector.broadcast %cst_11 : f32 to vector<1x256xf32>
    %38 = arith.subf %37, %36 : vector<1x256xf32>
    %39 = arith.mulf %35, %38 : vector<1x256xf32>
    %c0_12 = arith.constant 0 : index
    %c0_13 = arith.constant 0 : index
    %40 = vector.load %arg6[%c0_12, %c0_13] : memref<1x256xf32, #tpu.memory_space<vmem>>, vector<1x256xf32>
    %41 = arith.mulf %34, %39 : vector<1x256xf32>
    %cst_14 = arith.constant 0.000000e+00 : f32
    %42 = vector.broadcast %cst_14 : f32 to vector<1x256xf32>
    %43 = arith.select %20, %41, %42 : vector<1x256xi1>, vector<1x256xf32>
    %44 = arith.addf %40, %43 : vector<1x256xf32>
    %c0_15 = arith.constant 0 : index
    %c0_16 = arith.constant 0 : index
    %45 = vector.load %arg6[%c0_15, %c0_16] : memref<1x256xf32, #tpu.memory_space<vmem>>, vector<1x256xf32>
    tpu.vector_store %arg6[%c0_15, %c0_16], %44 {strides = array<i32>} : memref<1x256xf32, #tpu.memory_space<vmem>>, vector<1x256xf32>,
    %c0_17 = arith.constant 0 : index
    %c0_18 = arith.constant 0 : index
    %46 = vector.load %arg7[%c0_17, %c0_18] : memref<1x256xf32, #tpu.memory_space<vmem>>, vector<1x256xf32>
    %47 = arith.extui %20 : vector<1x256xi1> to vector<1x256xi32>
    %48 = arith.sitofp %47 : vector<1x256xi32> to vector<1x256xf32>
    %49 = arith.addf %46, %48 : vector<1x256xf32>
    %c0_19 = arith.constant 0 : index
    %c0_20 = arith.constant 0 : index
    %50 = vector.load %arg7[%c0_19, %c0_20] : memref<1x256xf32, #tpu.memory_space<vmem>>, vector<1x256xf32>
    tpu.vector_store %arg7[%c0_19, %c0_20], %49 {strides = array<i32>} : memref<1x256xf32, #tpu.memory_space<vmem>>, vector<1x256xf32>,
    %c0_i32_21 = arith.constant 0 : i32
    %51 = arith.cmpi eq, %arg2, %c0_i32_21 : i32
    %52 = arith.extui %51 : i1 to i32
    %c0_i32_22 = arith.constant 0 : i32
    %53 = arith.cmpi ne, %52, %c0_i32_22 : i32
    scf.if %53 {
      %c0_23 = arith.constant 0 : index
      %c0_24 = arith.constant 0 : index
      %54 = vector.load %arg6[%c0_23, %c0_24] : memref<1x256xf32, #tpu.memory_space<vmem>>, vector<1x256xf32>
      %55 = vector.shape_cast %54 : vector<1x256xf32> to vector<1x1x256xf32>
      %cst_25 = arith.constant dense<0.000000e+00> : vector<1xf32>
      %56 = vector.multi_reduction <add>, %55, %cst_25 [1, 2] : vector<1x1x256xf32> to vector<1xf32>
      %57 = vector.shape_cast %56 : vector<1xf32> to vector<1x1x1xf32>
      %58 = vector.extract %57[0, 0, 0] : f32 from vector<1x1x1xf32>
      %c0_26 = arith.constant 0 : index
      %c0_27 = arith.constant 0 : index
      %59 = vector.load %arg7[%c0_26, %c0_27] : memref<1x256xf32, #tpu.memory_space<vmem>>, vector<1x256xf32>
      %60 = vector.shape_cast %59 : vector<1x256xf32> to vector<1x1x256xf32>
      %cst_28 = arith.constant dense<0.000000e+00> : vector<1xf32>
      %61 = vector.multi_reduction <add>, %60, %cst_28 [1, 2] : vector<1x1x256xf32> to vector<1xf32>
      %62 = vector.shape_cast %61 : vector<1xf32> to vector<1x1x1xf32>
      %63 = vector.extract %62[0, 0, 0] : f32 from vector<1x1x1xf32>
      %64 = tpu.iota {dimensions = array<i32: 2>} : vector<1x1x128xi32>
      %c0_i32_29 = arith.constant 0 : i32
      %65 = vector.broadcast %c0_i32_29 : i32 to vector<1x1x128xi32>
      %66 = arith.cmpi eq, %64, %65 : vector<1x1x128xi32>
      %c1_i32_30 = arith.constant 1 : i32
      %67 = vector.broadcast %c1_i32_30 : i32 to vector<1x1x128xi32>
      %68 = arith.cmpi eq, %64, %67 : vector<1x1x128xi32>
      %cst_31 = arith.constant 0.000000e+00 : f32
      %69 = vector.broadcast %63 : f32 to vector<1x1x128xf32>
      %70 = vector.broadcast %cst_31 : f32 to vector<1x1x128xf32>
      %71 = arith.select %68, %69, %70 : vector<1x1x128xi1>, vector<1x1x128xf32>
      %72 = vector.broadcast %58 : f32 to vector<1x1x128xf32>
      %73 = arith.select %66, %72, %71 : vector<1x1x128xi1>, vector<1x1x128xf32>
      %c0_32 = arith.constant 0 : index
      %c0_33 = arith.constant 0 : index
      %c0_34 = arith.constant 0 : index
      %74 = vector.load %arg5[%c0_32, %c0_33, %c0_34] : memref<1x1x128xf32, #tpu.memory_space<vmem>>, vector<1x1x128xf32>
      tpu.vector_store %arg5[%c0_32, %c0_33, %c0_34], %73 {strides = array<i32>} : memref<1x1x128xf32, #tpu.memory_space<vmem>>, vector<1x1x128xf32>,
    } else {
    }
    return
  }
  func.func @transform_0(%arg0: i32, %arg1: i32, %arg2: i32) -> (i32, i32, i32) {
    %c1_i32 = arith.constant 1 : i32
    %0 = arith.muli %arg1, %c1_i32 : i32
    %1 = arith.addi %0, %arg2 : i32
    %c0_i32 = arith.constant 0 : i32
    %2 = arith.minsi %1, %c0_i32 : i32
    %c0_i32_0 = arith.constant 0 : i32
    %c0_i32_1 = arith.constant 0 : i32
    return %arg0, %c0_i32_0, %2 : i32, i32, i32
  }
  func.func @transform_1(%arg0: i32, %arg1: i32, %arg2: i32) -> (i32, i32, i32) {
    %c1_i32 = arith.constant 1 : i32
    %0 = arith.muli %arg1, %c1_i32 : i32
    %1 = arith.addi %0, %arg2 : i32
    %c0_i32 = arith.constant 0 : i32
    %2 = arith.minsi %1, %c0_i32 : i32
    %c0_i32_0 = arith.constant 0 : i32
    %c0_i32_1 = arith.constant 0 : i32
    return %arg0, %c0_i32_0, %2 : i32, i32, i32
  }
  func.func @transform_2(%arg0: i32, %arg1: i32, %arg2: i32) -> (i32, i32, i32) {
    %c1_i32 = arith.constant 1 : i32
    %0 = arith.muli %arg0, %c1_i32 : i32
    %1 = arith.addi %0, %arg1 : i32
    %c0_i32 = arith.constant 0 : i32
    %c0_i32_0 = arith.constant 0 : i32
    %c0_i32_1 = arith.constant 0 : i32
    return %1, %c0_i32, %c0_i32_0 : i32, i32, i32
  }
}

</mosaic_0001>

<llo_original>
// kernel: dice_loss_pallas.1
$region0: #{dice_loss_pallas.1}
  #allocation0 [shape = 'u32[]', space=smem, size = 0x4, offset = 0x4, fixed_abs, tag = 'smem constant byte address 0x4 - core index']
  #allocation1 [shape = 'u32[72,128]{1,0:T(1,128)}', space=vmem, size = 0x9000, scoped, tag = 'internal scratch']
  #allocation2 [shape = 'f32[1,256]{1,0:T(1,128)}', space=vmem, size = 0x400, scoped, tag = 'scratch operand']
  #allocation3 [shape = 'f32[1,256]{1,0:T(1,128)}', space=vmem, size = 0x400, scoped, tag = 'scratch operand']
  %s0 = inlined_call_operand.vmem [shape: f32[2,4,256], index: 0, kind: input, shape index: {}]
  %s1 = inlined_call_operand.vmem [shape: s32[2,1,256], index: 1, kind: input, shape index: {}]
  %s2 = inlined_call_operand.vmem [shape: f32[2,1,128], index: 2, kind: output, shape index: {}]
  %s3 = sld [smem:[#allocation0]]
  $region49: #{dice_loss_pallas.1} parent=0
    _
  %s5 = ssub.s32 1, %s3
  %s6 = scalar_select 0, %s5, %s3
  loop: start=0, step=1, limit=4
  $region2: #{dice_loss_pallas.1} parent=0 // loop_pre_header
    _
  $region3: #{dice_loss_pallas.1} parent=0 // loop_header
    %s8 = sphi 0, %s12
    %p9 = scmp.ge.s32.totalorder %s8, 4
    %s15 = sphi 0, %s34
    %s16 = sphi 0, %s30
    %s17 = sphi 0, %s26
    %s18 = sphi 0, %s15
    %s19 = sphi 0, %s16
    %s20 = sphi 0, %s17
    %s21 = sphi 0, %s18
    %s22 = sphi 0, %s19
    %s23 = sphi 0, %s20
    %s45 = sphi 0, %s47
    %s48 = sphi 0, %s45
    %s49 = sphi 0, %s48
    %s65 = sphi 0, %s49
    %s79 = sphi 0, %s81
    %s82 = sphi 0, %s79
    %s83 = sphi 0, %s82
    %s99 = sphi 0, %s83
    %s107 = sphi 0, %s109
    %s110 = sphi 0, %s107
    %s111 = sphi 0, %s110
    %s127 = sphi 0, %s111
  $region4: #{dice_loss_pallas.1} parent=0 // loop_header_branch
    %11 = sbr.rel (%p9) target = $region8
  $region5: #{dice_loss_pallas.1} parent=0 // loop_body
    %s13 = ssub.s32 %s8, 1
    %s14 = ssub.s32 %s8, 2
    %s24 = sadd.s32 1, %s17
    %p25 = scmp.ge.s32.totalorder %s24, 1
    %s26 = scalar_select %p25, 0, %s24
    %s27 = sadd.s32 1, %s16
    %s28 = scalar_select %p25, %s27, %s16
    %p29 = scmp.ge.s32.totalorder %s28, 1
    %s30 = scalar_select %p29, 0, %s28
    %s31 = sadd.s32 1, %s15
    %s32 = scalar_select %p29, %s31, %s15
    %p33 = scmp.ge.s32.totalorder %s32, 2
    %s34 = scalar_select %p33, 0, %s32
    %s35 = sadd.s32 %s16, %s17
    %p36 = scmp.lt.s32.totalorder %s35, 0
    %s37 = scalar_select %p36, %s35, 0
    %s38 = sadd.s32 %s30, %s26
    %p39 = scmp.lt.s32.totalorder %s38, 0
    %s40 = scalar_select %p39, %s38, 0
    %s41 = ssub.s32 %s15, %s34
    %s42 = ssub.s32 %s37, %s40
    %s43 = sor.u32 %s41, %s42
    %p44 = scmp.eq.s32.totalorder %s43, 0
    %s46 = sadd.s32 %s45, 1
    %s47 = scalar_select %p44, %s45, %s46
    %p50 = pneg %p44
    %p51 = scmp.eq.s32.totalorder %s8, 1
    %p52 = por %p50, %p51
    %p53 = scmp.ne.s32.totalorder %s45, %s48
    %p54 = scmp.eq.s32.totalorder %s8, 0
    %p55 = por %p53, %p54
    %p56 = scmp.ne.s32.totalorder %s45, %s48
    %p57 = scmp.eq.s32.totalorder %s13, 1
    %p58 = por %p56, %p57
    %p59 = scmp.ne.s32.totalorder %s48, %s49
    %p60 = scmp.eq.s32.totalorder %s13, 0
    %p61 = por %p59, %p60
    %p62 = scmp.ne.s32.totalorder %s48, %s49
    %p63 = scmp.eq.s32.totalorder %s14, 1
    %p64 = por %p62, %p63
    %p66 = scmp.ne.s32.totalorder %s49, %s65
    %p67 = scmp.eq.s32.totalorder %s14, 0
    %p68 = por %p66, %p67
    %s69 = sadd.s32 %s16, %s17
    %p70 = scmp.lt.s32.totalorder %s69, 0
    %s71 = scalar_select %p70, %s69, 0
    %s72 = sadd.s32 %s30, %s26
    %p73 = scmp.lt.s32.totalorder %s72, 0
    %s74 = scalar_select %p73, %s72, 0
    %s75 = ssub.s32 %s15, %s34
    %s76 = ssub.s32 %s71, %s74
    %s77 = sor.u32 %s75, %s76
    %p78 = scmp.eq.s32.totalorder %s77, 0
    %s80 = sadd.s32 %s79, 1
    %s81 = scalar_select %p78, %s79, %s80
    %p84 = pneg %p78
    %p85 = scmp.eq.s32.totalorder %s8, 1
    %p86 = por %p84, %p85
    %p87 = scmp.ne.s32.totalorder %s79, %s82
    %p88 = scmp.eq.s32.totalorder %s8, 0
    %p89 = por %p87, %p88
    %p90 = scmp.ne.s32.totalorder %s79, %s82
    %p91 = scmp.eq.s32.totalorder %s13, 1
    %p92 = por %p90, %p91
    %p93 = scmp.ne.s32.totalorder %s82, %s83
    %p94 = scmp.eq.s32.totalorder %s13, 0
    %p95 = por %p93, %p94
    %p96 = scmp.ne.s32.totalorder %s82, %s83
    %p97 = scmp.eq.s32.totalorder %s14, 1
    %p98 = por %p96, %p97
    %p100 = scmp.ne.s32.totalorder %s83, %s99
    %p101 = scmp.eq.s32.totalorder %s14, 0
    %p102 = por %p100, %p101
    %s103 = sadd.s32 %s15, %s16
    %s104 = sadd.s32 %s34, %s30
    %s105 = ssub.s32 %s103, %s104
    %p106 = scmp.eq.s32.totalorder %s105, 0
    %s108 = sadd.s32 %s107, 1
    %s109 = scalar_select %p106, %s107, %s108
    %p112 = pneg %p106
    %p113 = scmp.eq.s32.totalorder %s8, 1
    %p114 = por %p112, %p113
    %p115 = scmp.ne.s32.totalorder %s107, %s110
    %p116 = scmp.eq.s32.totalorder %s8, 0
    %p117 = por %p115, %p116
    %p118 = scmp.ne.s32.totalorder %s107, %s110
    %p119 = scmp.eq.s32.totalorder %s13, 1
    %p120 = por %p118, %p119
    %p121 = scmp.ne.s32.totalorder %s110, %s111
    %p122 = scmp.eq.s32.totalorder %s13, 0
    %p123 = por %p121, %p122
    %p124 = scmp.ne.s32.totalorder %s110, %s111
    %p125 = scmp.eq.s32.totalorder %s14, 1
    %p126 = por %p124, %p125
    %p128 = scmp.ne.s32.totalorder %s111, %s127
    %p129 = scmp.eq.s32.totalorder %s14, 0
    %p130 = por %p128, %p129
    %p131 = scmp.le.s32.totalorder 1, %s8
    %p132 = scmp.lt.s32.totalorder %s8, 3
    %p133 = pnand %p131, %p132
    %p134 = pneg %p133
    // Predicated region
    $region9: #{dice_loss_pallas.1} parent=5 // pred_check
      _
    $region10: #{dice_loss_pallas.1} parent=5 // pred_check_branch
      %136 = sbr.rel (%p133) target = $region12
    $region11: #{dice_loss_pallas.1} parent=5 // pred_region
      %s137 = ssub.s32 %s8, 1
    $region12: #{dice_loss_pallas.1} parent=5 // pred_fallthru
      _
    %p138 = scmp.lt.s32.totalorder %s8, 2
    // Predicated region
    $region13: #{dice_loss_pallas.1} parent=5 // pred_check
      %p139 = pneg %p138
    $region14: #{dice_loss_pallas.1} parent=5 // pred_check_branch
      %141 = sbr.rel (%p139) target = $region16
    $region15: #{dice_loss_pallas.1} parent=5 // pred_region
      // Predicated region
      $region17: #{dice_loss_pallas.1} parent=15 // pred_check
        %p142 = pneg %p55
      $region18: #{dice_loss_pallas.1} parent=15 // pred_check_branch
        %144 = sbr.rel (%p142) target = $region20
      $region19: #{dice_loss_pallas.1} parent=15 // pred_region
        %s145 = sadd.s32 %s16, %s17
        %p146 = scmp.lt.s32.totalorder %s145, 0
        %s147 = scalar_select %p146, %s145, 0
        %s148 = smul.u32 2, %s147
        %p149 = scmp.lt.s32.totalorder %s15, 1
        %s150 = scalar_select %p149, %s15, 1
        %p151 = scmp.lt.s32.totalorder %s148, 1
        %s152 = scalar_select %p151, %s148, 1
        %s153 = smul.addr %s150, 2
        %s154 = sadd.s32 %s152, %s153
        %s155 = smul.addr %s154, 4
        %s156 = scalar_lea.vmem %s0, %s155
        %s157 = sadd.s32 %s16, %s17
        %p158 = scmp.lt.s32.totalorder %s157, 0
        %s159 = scalar_select %p158, %s157, 0
        %s160 = smul.u32 2, %s159
      $region20: #{dice_loss_pallas.1} parent=15 // pred_fallthru
        _
      // Predicated region
      $region21: #{dice_loss_pallas.1} parent=15 // pred_check
        %p161 = pneg %p89
      $region22: #{dice_loss_pallas.1} parent=15 // pred_check_branch
        %163 = sbr.rel (%p161) target = $region24
      $region23: #{dice_loss_pallas.1} parent=15 // pred_region
        %s164 = sadd.s32 %s16, %s17
        %p165 = scmp.lt.s32.totalorder %s164, 0
        %s166 = scalar_select %p165, %s164, 0
        %s167 = smul.u32 2, %s166
        %p168 = scmp.lt.s32.totalorder %s15, 1
        %s169 = scalar_select %p168, %s15, 1
        %p170 = scmp.lt.s32.totalorder %s167, 1
        %s171 = scalar_select %p170, %s167, 1
        %s172 = smul.addr %s169, 2
        %s173 = sadd.s32 %s171, %s172
        %s174 = scalar_lea.vmem %s1, %s173
        %s175 = sadd.s32 %s16, %s17
        %p176 = scmp.lt.s32.totalorder %s175, 0
        %s177 = scalar_select %p176, %s175, 0
        %s178 = smul.u32 2, %s177
      $region24: #{dice_loss_pallas.1} parent=15 // pred_fallthru
        _
    $region16: #{dice_loss_pallas.1} parent=5 // pred_fallthru
      _
    %p179 = scmp.le.s32.totalorder 1, %s8
    %p180 = scmp.lt.s32.totalorder %s8, 3
    %p181 = pnand %p179, %p180
    %p182 = pneg %p181
    // Predicated region
    $region25: #{dice_loss_pallas.1} parent=5 // pred_check
      _
    $region26: #{dice_loss_pallas.1} parent=5 // pred_check_branch
      %184 = sbr.rel (%p181) target = $region28
    $region27: #{dice_loss_pallas.1} parent=5 // pred_region
      %s185 = ssub.s32 %s8, 1
      %s186 = sadd.s32 %s19, %s20
      %p187 = scmp.lt.s32.totalorder %s186, 0
      %s188 = scalar_select %p187, %s186, 0
      %s189 = smul.u32 2, %s188
      %p190 = scmp.lt.s32.totalorder %s18, 1
      %s191 = scalar_select %p190, %s18, 1
      %p192 = scmp.lt.s32.totalorder %s189, 1
      %s193 = scalar_select %p192, %s189, 1
      %s194 = smul.addr %s191, 2
      %s195 = sadd.s32 %s193, %s194
      %s196 = smul.addr %s195, 4
      %s197 = scalar_lea.vmem %s0, %s196
      %p198 = pneg %p61
      %p199 = pneg %p58
      %s200 = sadd.s32 %s19, %s20
      %p201 = scmp.lt.s32.totalorder %s200, 0
      %s202 = scalar_select %p201, %s200, 0
      %s203 = smul.u32 2, %s202
      %p204 = scmp.lt.s32.totalorder %s18, 1
      %s205 = scalar_select %p204, %s18, 1
      %p206 = scmp.lt.s32.totalorder %s203, 1
      %s207 = scalar_select %p206, %s203, 1
      %s208 = smul.addr %s205, 2
      %s209 = sadd.s32 %s207, %s208
      %s210 = scalar_lea.vmem %s1, %s209
      %p211 = pneg %p95
      %p212 = pneg %p92
      %p213 = pneg %p123
      %p214 = pneg %p120
      %s215 = sadd.s32 %s18, %s19
      %p216 = scmp.lt.s32.totalorder %s215, 1
      %s217 = scalar_select %p216, %s215, 1
      %s218 = scalar_lea.vmem %s2, %s217
      %s219 = sadd.s32 %s19, %s20
      %p220 = scmp.lt.s32.totalorder %s219, 0
      %s221 = scalar_select %p220, %s219, 0
      %s222 = smul.u32 2, %s221
      %p223 = scmp.lt.s32.totalorder %s18, 1
      %s224 = scalar_select %p223, %s18, 1
      %p225 = scmp.lt.s32.totalorder %s222, 1
      %s226 = scalar_select %p225, %s222, 1
      %s227 = smul.addr %s224, 2
      %s228 = sadd.s32 %s226, %s227
      %s229 = smul.addr %s228, 4
      %s230 = scalar_lea.vmem %s0, %s229
      %s231 = sadd.s32 %s19, %s20
      %p232 = scmp.lt.s32.totalorder %s231, 0
      %s233 = scalar_select %p232, %s231, 0
      %s234 = smul.u32 2, %s233
      %s235 = sadd.s32 %s19, %s20
      %p236 = scmp.lt.s32.totalorder %s235, 0
      %s237 = scalar_select %p236, %s235, 0
      %s238 = smul.u32 2, %s237
      %p239 = scmp.lt.s32.totalorder %s18, 1
      %s240 = scalar_select %p239, %s18, 1
      %p241 = scmp.lt.s32.totalorder %s238, 1
      %s242 = scalar_select %p241, %s238, 1
      %s243 = smul.addr %s240, 2
      %s244 = sadd.s32 %s242, %s243
      %s245 = scalar_lea.vmem %s1, %s244
      %s246 = sadd.s32 %s19, %s20
      %p247 = scmp.lt.s32.totalorder %s246, 0
      %s248 = scalar_select %p247, %s246, 0
      %s249 = smul.u32 2, %s248
      %s250 = sadd.s32 %s18, %s19
      %p251 = scmp.lt.s32.totalorder %s250, 1
      %s252 = scalar_select %p251, %s250, 1
      %s253 = scalar_lea.vmem %s2, %s252
      %s254 = sadd.s32 %s18, %s19
      %p255 = scmp.eq.s32.totalorder %s20, 0
      // Predicated region
      $region29: #{dice_loss_pallas.1} parent=27 // pred_check
        %p256 = pneg %p255
      $region30: #{dice_loss_pallas.1} parent=27 // pred_check_branch
        %258 = sbr.rel (%p256) target = $region32
      $region31: #{dice_loss_pallas.1} parent=27 // pred_region
        %v259 = vlaneseq
        %vm260 = vcmp.ge.s32.totalorder %v259, 0
        %vm261 = vcmp.lt.s32.totalorder %v259, 256
        %vm262 = vmand %vm260, %vm261
        %263 = vst.msk [vmem:[#allocation2] sm:$0x3] %vm262, 0.0
        %264 = vst.msk [vmem:[#allocation3] sm:$0x3] %vm262, 0.0
      $region32: #{dice_loss_pallas.1} parent=27 // pred_fallthru
        _
      %v265 = vld [vmem:[%s230] sm:$0xff]
      %v266 = vld [vmem:[%s245] sm:$0x3]
      %s267 = sadd.s32 %s19, %s20
      %v268 = vlaneseq
      %v269 = vand.u32 %v268, 127
      %v270 = vadd.s32 %v269, 128
      %s271 = smul.u32 %s267, 256
      %v272 = vstv %s271
      %v273 = vadd.s32 %v272, %v269
      %v274 = vadd.s32 %v272, %v270
      %vm275 = vcmp.lt.s32.totalorder %v273, 256
      %vm276 = vcmp.lt.s32.totalorder %v274, 256
      %vm277 = vcmp.ge.s32.totalorder %v266, 0
      %vm278 = vcmp.lt.s32.totalorder %v266, 4
      %vm279 = vmand %vm277, %vm278
      %v280 = vsel %vm279, 1, 0
      %v281 = vperm.slane %v280, 0
      %v282 = vperm.slane %v280, 1
      %vm283 = vcmp.ne.s32.totalorder %v281, 0
      %vm284 = vcmp.ne.s32.totalorder %v282, 0
      %vm285 = vmand %vm275, %vm283
      %vm286 = vmand %vm276, %vm284
      %288 = vst [vmem:[#allocation1] ss:$2 sm:$0xff] %v265
      %v289 = vld.sshfl [vmem:[#allocation1] sm:$0xff pattern:$0x75316420]
      %v290 = vld.sshfl [vmem:[#allocation1 + $0x8] sm:$0xff pattern:$0x75316420]
      %vm293 = vcmask 1043456
      %v294 = vsel %vm293, %v289, -inf
      %v295 = vrot.slane %v294, 4
      %v296 = vmax.f32 %v294, %v295
      %v297 = vrot.slane %v296, 2
      %v298 = vmax.f32 %v296, %v297
      %v299 = vrot.slane %v298, 1
      %v300 = vmax.f32 %v298, %v299
      %v301 = vsel %vm293, %v290, -inf
      %v302 = vrot.slane %v301, 4
      %v303 = vmax.f32 %v301, %v302
      %v304 = vrot.slane %v303, 2
      %v305 = vmax.f32 %v303, %v304
      %v306 = vrot.slane %v305, 1
      %v307 = vmax.f32 %v305, %v306
      %v310 = vrot.slane %v307, 4
      %v311 = vsel %vm293, %v300, %v310
      %v313 = vsub.f32 %v265, %v311
      %v314 = vmul.f32 %v313, 1.442695
      %v315 = vpow.pop %v314
      %317 = vst [vmem:[#allocation1] ss:$2 sm:$0xff] %v315
      %v318 = vld.sshfl [vmem:[#allocation1] sm:$0xff pattern:$0x75316420]
      %v319 = vld.sshfl [vmem:[#allocation1 + $0x8] sm:$0xff pattern:$0x75316420]
      %v322 = vsel %vm293, %v318, 0.0
      %v323 = vrot.slane %v322, 4
      %v324 = vadd.f32 %v322, %v323
      %v325 = vrot.slane %v324, 2
      %v326 = vadd.f32 %v324, %v325
      %v327 = vrot.slane %v326, 1
      %v328 = vadd.f32 %v326, %v327
      %v329 = vsel %vm293, %v319, 0.0
      %v330 = vrot.slane %v329, 4
      %v331 = vadd.f32 %v329, %v330
      %v332 = vrot.slane %v331, 2
      %v333 = vadd.f32 %v331, %v332
      %v334 = vrot.slane %v333, 1
      %v335 = vadd.f32 %v333, %v334
      %v336 = vlaneseq
      %v337 = vshrl.u32 %v336, 7
      %v338 = vperm.slane %v266, 0
      %v339 = vperm.slane %v266, 1
      %vm340 = vcmp.eq.s32.totalorder %v337, %v338
      %vm341 = vcmp.eq.s32.totalorder %v337, %v339
      %342 = vst [vmem:[#allocation1] ss:$2 sm:$0xff] %v315
      %v343 = vld.sshfl [vmem:[#allocation1] sm:$0xff pattern:$0x75316420]
      %v344 = vld.sshfl [vmem:[#allocation1 + $0x8] sm:$0xff pattern:$0x75316420]
      %v347 = vsel %vm340, %v343, 0.0
      %v348 = vsel %vm341, %v344, 0.0
      %v349 = vsel %vm293, %v347, 0.0
      %v350 = vrot.slane %v349, 4
      %v351 = vadd.f32 %v349, %v350
      %v352 = vrot.slane %v351, 2
      %v353 = vadd.f32 %v351, %v352
      %v354 = vrot.slane %v353, 1
      %v355 = vadd.f32 %v353, %v354
      %v356 = vsel %vm293, %v348, 0.0
      %v357 = vrot.slane %v356, 4
      %v358 = vadd.f32 %v356, %v357
      %v359 = vrot.slane %v358, 2
      %v360 = vadd.f32 %v358, %v359
      %v361 = vrot.slane %v360, 1
      %v362 = vadd.f32 %v360, %v361
      %v363 = vrcp.pop %v328
      %v364 = vrcp.pop %v335
      %v365 = vmul.f32 %v328, %v363
      %v366 = vmul.f32 %v335, %v364
      %v367 = vsub.f32 2.0, %v365
      %v368 = vsub.f32 2.0, %v366
      %v369 = vmul.f32 %v363, %v367
      %v370 = vmul.f32 %v364, %v368
      %v371 = vld [vmem:[#allocation2] sm:$0x3]
      %v372 = vmul.f32 %v355, %v369
      %v373 = vmul.f32 %v362, %v370
      %v374 = vsel %vm285, %v372, 0.0
      %v375 = vsel %vm286, %v373, 0.0
      %v378 = vrot.slane %v375, 7
      %vm379 = vcmask 1040384
      %v380 = vsel %vm379, %v374, %v378
      %v382 = vadd.f32 %v371, %v380
      %v383 = vlaneseq
      %vm384 = vcmp.ge.s32.totalorder %v383, 0
      %vm385 = vcmp.lt.s32.totalorder %v383, 256
      %vm386 = vmand %vm384, %vm385
      %387 = vst.msk [vmem:[#allocation2] sm:$0x3] %vm386, %v382
      %v388 = vld [vmem:[#allocation3] sm:$0x3]
      %v389 = vsel %vm285, 1, 0
      %v390 = vsel %vm286, 1, 0
      %v391 = vcvt.s32.f32 %v389
      %v392 = vcvt.s32.f32 %v390
      %v395 = vrot.slane %v392, 7
      %v396 = vsel %vm379, %v391, %v395
      %v398 = vadd.f32 %v388, %v396
      %399 = vst.msk [vmem:[#allocation3] sm:$0x3] %vm386, %v398
      // Predicated region
      $region33: #{dice_loss_pallas.1} parent=27 // pred_check
        %p400 = pneg %p255
      $region34: #{dice_loss_pallas.1} parent=27 // pred_check_branch
        %402 = sbr.rel (%p400) target = $region36
      $region35: #{dice_loss_pallas.1} parent=27 // pred_region
        %v403 = vld [vmem:[#allocation2] sm:$0x3]
        %v405 = vperm.slane %v403, 0
        %v406 = vperm.slane %v403, 1
        %v409 = vsel %vm379, %v405, 0.0
        %v410 = vsel %vm379, %v406, 0.0
        %v411 = vadd.f32 %v409, %v410
        %412 = vadd.xlane.f32.xlu0 %v411
        %v413 = vpop.xlane.xlu0 %412
        %v414 = vrot.slane %v413, 4
        %v415 = vadd.f32 %v413, %v414
        %v416 = vrot.slane %v415, 2
        %v417 = vadd.f32 %v415, %v416
        %v418 = vrot.slane %v417, 1
        %v419 = vadd.f32 %v417, %v418
        %s420 = vtos %v419
        %v421 = vld [vmem:[#allocation3] sm:$0x3]
        %v423 = vperm.slane %v421, 0
        %v424 = vperm.slane %v421, 1
        %v427 = vsel %vm379, %v423, 0.0
        %v428 = vsel %vm379, %v424, 0.0
        %v429 = vadd.f32 %v427, %v428
        %430 = vadd.xlane.f32.xlu0 %v429
        %v431 = vpop.xlane.xlu0 %430
        %v432 = vrot.slane %v431, 4
        %v433 = vadd.f32 %v431, %v432
        %v434 = vrot.slane %v433, 2
        %v435 = vadd.f32 %v433, %v434
        %v436 = vrot.slane %v435, 1
        %v437 = vadd.f32 %v435, %v436
        %s438 = vtos %v437
        %vm439 = vcmp.eq.s32.totalorder %v269, 0
        %vm440 = vcmp.eq.s32.totalorder %v269, 1
        %v441 = vstv %s438
        %v442 = vsel %vm440, %v441, 0.0
        %v443 = vstv %s420
        %v444 = vsel %vm439, %v443, %v442
        %445 = vst [vmem:[%s253] sm:$0x1] %v444
      $region36: #{dice_loss_pallas.1} parent=27 // pred_fallthru
        _
      %s446 = sadd.s32 %s18, %s19
      %p447 = scmp.lt.s32.totalorder %s446, 1
      %s448 = scalar_select %p447, %s446, 1
      %s449 = scalar_lea.vmem %s2, %s448
      // Predicated region
      $region37: #{dice_loss_pallas.1} parent=27 // pred_check
        %p450 = pneg %p120
      $region38: #{dice_loss_pallas.1} parent=27 // pred_check_branch
        %452 = sbr.rel (%p450) target = $region40
      $region39: #{dice_loss_pallas.1} parent=27 // pred_region
        %s453 = sadd.s32 %s18, %s19
      $region40: #{dice_loss_pallas.1} parent=27 // pred_fallthru
        _
    $region28: #{dice_loss_pallas.1} parent=5 // pred_fallthru
      _
    %p454 = scmp.le.s32.totalorder 2, %s8
    // Predicated region
    $region41: #{dice_loss_pallas.1} parent=5 // pred_check
      %p455 = pneg %p454
    $region42: #{dice_loss_pallas.1} parent=5 // pred_check_branch
      %457 = sbr.rel (%p455) target = $region44
    $region43: #{dice_loss_pallas.1} parent=5 // pred_region
      %s458 = ssub.s32 %s8, 2
      // Predicated region
      $region45: #{dice_loss_pallas.1} parent=43 // pred_check
        %p459 = pneg %p126
      $region46: #{dice_loss_pallas.1} parent=43 // pred_check_branch
        %461 = sbr.rel (%p459) target = $region48
      $region47: #{dice_loss_pallas.1} parent=43 // pred_region
        %s462 = sadd.s32 %s21, %s22
        %p463 = scmp.lt.s32.totalorder %s462, 1
        %s464 = scalar_select %p463, %s462, 1
        %s465 = scalar_lea.vmem %s2, %s464
      $region48: #{dice_loss_pallas.1} parent=43 // pred_fallthru
        _
    $region44: #{dice_loss_pallas.1} parent=5 // pred_fallthru
      _
  $region6: #{dice_loss_pallas.1} parent=0 // loop_footer
    %s12 = sadd.s32 1, %s8
  $region7: #{dice_loss_pallas.1} parent=0 // loop_footer_branch
    %7 = sbr.rel target = $region3
  $region8: #{dice_loss_pallas.1} parent=0 // loop_exit
    _

</llo_original>
